<compile_context>
chip_gen: v7x
topology: tpu7x:2x2x1
jax: 0.10.0
libtpu: 0.0.40
codegen_flags: <defaults>
</compile_context>

<pallas_src>
import math
import numpy as np
import jax
import jax.numpy as jnp
from jax.experimental import pallas as pl
from jax.experimental.pallas import tpu as pltpu

_TWO_PI = 2.0 * np.pi


def _round_up(x, m):
    return (x + m - 1) // m * m


def _choose_group(L, UD, max_group=8):
    """Fold G frames into the lane dim so G*UD is a multiple of 128."""
    g = 128 // math.gcd(UD, 128)
    if 1 < g <= max_group and L % g == 0:
        return g
    return 1


def _choose_row_tile(LG, GUD, batch, align, target_bytes=2 << 20):
    """Row tile (multiple of `align`) giving ~2 MiB f32 blocks."""
    cap = max(align, (target_bytes // (GUD * 4)) // align * align)
    if batch == 1 and LG > align:
        # v7x has 2 TensorCores: keep >= 2 row tiles when there is no batch axis.
        half = _round_up((LG + 1) // 2, align)
        cap = max(align, min(cap, half))
    lg_a = _round_up(LG, align)
    if lg_a <= cap:
        return lg_a
    best_t, best_score = align, None
    for t in range(cap, align - 1, -align):
        score = ((-LG) % t, -t)            # least padding, then biggest tile
        if best_score is None or score < best_score:
            best_score, best_t = score, t
    return best_t


def _make_kernel(G):
    def kernel(frame_ref, const_ref, z_ref, sine_ref, noise_ref):
        fr = frame_ref[...]                       # (1, TL, 4G) per-frame scalars
        cs = const_ref[...]                       # (1, 3G+1, G*UD) lane constants
        arg = cs[:, 2 * G:2 * G + 1, :]           # random phase row, (1, 1, GUD)
        ampvm = None
        namp = None
        for g in range(G):                        # static unroll, G <= 8
            fg = fr[:, :, g:g + 1]                    # f0 / sr
            cg = fr[:, :, G + g:G + g + 1]            # cumulative phase
            ag = fr[:, :, 2 * G + g:2 * G + g + 1]    # sine_amplitude * voiced
            ng = fr[:, :, 3 * G + g:3 * G + g + 1]    # noise amplitude
            uh_g = cs[:, 2 * g:2 * g + 1, :]          # (u+1)*(d+1), masked to group g
            hm_g = cs[:, 2 * g + 1:2 * g + 2, :]      # (d+1), masked to group g
            arg = arg + fg * uh_g + cg * hm_g
            if G == 1:
                ampvm, namp = ag, ng                  # plain lane broadcast
            else:
                mk_g = cs[:, 2 * G + 1 + g:2 * G + 2 + g, :]   # group lane mask
                a_t, n_t = ag * mk_g, ng * mk_g
                ampvm = a_t if ampvm is None else ampvm + a_t
                namp = n_t if namp is None else namp + n_t
        arg = arg - jnp.floor(arg)                # cheap range reduction for sin
        sine = jnp.sin(_TWO_PI * arg) * ampvm     # (1, TL, GUD)
        noise = namp * z_ref[...]
        noise_ref[...] = noise.astype(noise_ref.dtype)
        sine_ref[...] = (sine + noise).astype(sine_ref.dtype)
    return kernel


def sine_generator_forward(f0, upsampling_factor, *, sampling_rate,
                           num_harmonics=0, sine_amplitude=0.1,
                           noise_stddev=0.003, voiced_threshold=0.0,
                           random_phase=None, noise_z=None, rng_key=None,
                           row_tile=None, out_dtype=jnp.float32):
    """Pallas TPU SineGenerator.forward.

    Returns (sine_waveforms, voiced_mask, noise) of shapes
    (B, L*U, D), (B, L*U, 1), (B, L*U, D) with D = num_harmonics + 1.
    Set out_dtype=jnp.bfloat16 to halve HBM write traffic (math stays f32).
    """
    f0 = jnp.asarray(f0, jnp.float32)
    B, L = f0.shape
    U = int(upsampling_factor)
    D = int(num_harmonics) + 1
    UD = U * D

    if rng_key is None:
        rng_key = jax.random.PRNGKey(0)
    k_rp, k_z = jax.random.split(rng_key)
    if random_phase is None:
        random_phase = jax.random.uniform(k_rp, (1, 1, 1, D), dtype=jnp.float32)
        random_phase = random_phase.at[..., 0].set(0.0)
    if noise_z is None:
        # TODO(synk): on-chip pltpu.prng_* noise would delete this HBM stream,
        # but prng_seed has no interpret/CPU lowering, so noise is streamed.
        noise_z = jax.random.normal(k_z, (B, L, U, D), dtype=jnp.float32)
    noise_z = jnp.asarray(noise_z, jnp.float32).reshape(B, L, UD)

    # ---- per-frame scalars (tiny, plain JAX; cumsum is inherently serial) ----
    finv = f0 / float(sampling_rate)                       # f0 / sr
    frame_inc = finv * float(U)
    rem = jnp.fmod(frame_inc[:, :-1] + 0.5, 1.0) - 0.5
    cum = jnp.pad(jnp.fmod(jnp.cumsum(rem, axis=1), 1.0), ((0, 0), (1, 0)))
    vm = (f0 > voiced_threshold).astype(jnp.float32)
    ampvm = vm * float(sine_amplitude)                     # amplitude folded in
    namp = vm * float(noise_stddev) + (1.0 - vm) * (float(sine_amplitude) / 3.0)

    # ---- lane-density grouping: (B, L, UD) -> (B, L/G, G*UD) -----------------
    G = _choose_group(L, UD)
    LG, GUD = L // G, G * UD
    frames = jnp.concatenate(
        [x.reshape(B, LG, G) for x in (finv, cum, ampvm, namp)], axis=-1)
    z = noise_z.reshape(B, LG, GUD)

    # ---- per-lane constants (group-masked), tiny resident input --------------
    u_idx = np.arange(1, U + 1, dtype=np.float32)
    h_idx = np.arange(1, D + 1, dtype=np.float32)
    uh = (u_idx[:, None] * h_idx[None, :]).reshape(UD)     # (u+1)*(d+1)
    harm = np.tile(h_idx, U)                               # (d+1)
    NC = 3 * G + 1
    base = np.zeros((NC, GUD), np.float32)
    for g in range(G):
        base[2 * g, g * UD:(g + 1) * UD] = uh
        base[2 * g + 1, g * UD:(g + 1) * UD] = harm
        base[2 * G + 1 + g, g * UD:(g + 1) * UD] = 1.0
    consts = jnp.asarray(base)
    rp_row = jnp.tile(jnp.reshape(jnp.asarray(random_phase, jnp.float32), (D,)),
                      (U * G,))                            # (GUD,)
    consts = consts.at[2 * G, :].set(rp_row)[None]         # (1, NC, GUD)

    # ---- row tiling, pad ragged L/G up to a multiple of the tile -------------
    align = 16 if np.dtype(out_dtype) == np.dtype(jnp.bfloat16) else 8
    TL = int(row_tile) if row_tile is not None else _choose_row_tile(LG, GUD, B, align)
    assert TL % align == 0, (TL, align)
    LG_pad = _round_up(LG, TL)
    if LG_pad != LG:
        pad = ((0, 0), (0, LG_pad - LG), (0, 0))
        frames = jnp.pad(frames, pad)
        z = jnp.pad(z, pad)
    grid = (B, LG_pad // TL)

    big_spec = pl.BlockSpec((1, TL, GUD), lambda b, r: (b, r, 0))
    frame_spec = pl.BlockSpec((1, TL, 4 * G), lambda b, r: (b, r, 0))
    const_spec = pl.BlockSpec((1, NC, GUD), lambda b, r: (0, 0, 0))
    out_shapes = (jax.ShapeDtypeStruct((B, LG_pad, GUD), out_dtype),   # sine
                  jax.ShapeDtypeStruct((B, LG_pad, GUD), out_dtype))   # noise

    n_el = B * LG_pad * GUD
    out_bytes = np.dtype(out_dtype).itemsize
    cost = pl.CostEstimate(flops=14 * n_el, transcendentals=n_el,
                           bytes_accessed=n_el * (4 + 2 * out_bytes))

    sine3, noise3 = pl.pallas_call(
        _make_kernel(G),
        out_shape=out_shapes,
        grid_spec=pltpu.PrefetchScalarGridSpec(
            num_scalar_prefetch=0, grid=grid,
            in_specs=[frame_spec, const_spec, big_spec],
            out_specs=[big_spec, big_spec]),
        compiler_params=pltpu.CompilerParams(
            dimension_semantics=("parallel", "parallel"),
            vmem_limit_bytes=32 * 1024 * 1024),
        cost_estimate=cost,
    )(frames, consts, z)

    if LG_pad != LG:
        sine3 = sine3[:, :LG, :]
        noise3 = noise3[:, :LG, :]
    # (B, L/G, G*U*D) -> (B, L*U, D) is a pure view (same memory order).
    sine_waveforms = sine3.reshape(B, L * U, D)
    noise = noise3.reshape(B, L * U, D)
    # voiced mask is a per-frame broadcast; produced in the wrapper instead of
    # a 1-lane kernel store stream.
    voiced_mask = jnp.repeat(vm, U, axis=1).reshape(B, L * U, 1).astype(out_dtype)
    return sine_waveforms, voiced_mask, noise


def _reference_forward(f0, U, random_phase, noise_z, *, sampling_rate,
                       sine_amplitude, noise_stddev, voiced_threshold):
    """Pure-JAX transcription of the PyTorch forward (same rp / z arrays)."""
    f0 = jnp.asarray(f0, jnp.float32)
    B, L = f0.shape
    D = random_phase.shape[-1]
    grid = jnp.arange(1, U + 1, dtype=jnp.float32)
    phase_inc = f0[..., None] / sampling_rate * grid             # (B, L, U)
    rem = jnp.fmod(phase_inc[:, :-1, -1:] + 0.5, 1.0) - 0.5
    cum = jnp.fmod(jnp.cumsum(rem, axis=1), 1.0)
    cum = jnp.pad(cum, ((0, 0), (1, 0), (0, 0)))
    phase_inc = (phase_inc + cum).reshape(B, L * U, 1)
    harm = jnp.arange(1, D + 1, dtype=jnp.float32).reshape(1, 1, D)
    arg = phase_inc * harm + jnp.reshape(random_phase, (1, 1, D))
    sine = jnp.sin(2.0 * np.pi * arg) * sine_amplitude
    vm = (f0 > voiced_threshold).astype(jnp.float32)
    vm_up = jnp.repeat(vm, U, axis=1)[..., None]
    noise_amp = vm_up * noise_stddev + (1.0 - vm_up) * (sine_amplitude / 3.0)
    noise = noise_amp * jnp.asarray(noise_z, jnp.float32).reshape(B, L * U, D)
    return sine * vm_up + noise, vm_up, noise


if __name__ == "__main__":
    B, L, U = 2, 16, 16
    sampling_rate = 16000
    num_harmonics = 3                    # D = 4, U*D = 64 -> G = 2, lane dim 128
    D = num_harmonics + 1
    params = dict(sampling_rate=sampling_rate, sine_amplitude=0.1,
                  noise_stddev=0.003, voiced_threshold=0.0)

    key = jax.random.PRNGKey(0)
    k_f0, k_rp, k_z, k_f2 = jax.random.split(key, 4)

    raw = jax.random.uniform(k_f0, (B, L), dtype=jnp.float32)
    f0 = jnp.where(raw > 0.3, 80.0 + 300.0 * raw, 0.0)   # voiced + unvoiced mix

    random_phase = jax.random.uniform(k_rp, (1, 1, 1, D), dtype=jnp.float32)
    random_phase = random_phase.at[..., 0].set(0.0)
    noise_z = jax.random.normal(k_z, (B, L, U, D), dtype=jnp.float32)

    ref_sine, ref_vm, ref_noise = _reference_forward(
        f0, U, random_phase, noise_z, **params)

    # ---- float32 outputs: parity with the reference --------------------------
    sine_w, vmask, noise = sine_generator_forward(
        f0, U, num_harmonics=num_harmonics, random_phase=random_phase,
        noise_z=noise_z, **params)
    jax.block_until_ready((sine_w, vmask, noise))
    assert sine_w.shape == (B, L * U, D)
    assert vmask.shape == (B, L * U, 1)
    assert noise.shape == (B, L * U, D)
    np.testing.assert_allclose(np.asarray(vmask), np.asarray(ref_vm), atol=1e-6)
    np.testing.assert_allclose(np.asarray(noise), np.asarray(ref_noise), atol=1e-3)
    np.testing.assert_allclose(np.asarray(sine_w), np.asarray(ref_sine), atol=1e-3)

    # ---- bfloat16 outputs: halves HBM write traffic ---------------------------
    sine_bf, vmask_bf, noise_bf = sine_generator_forward(
        f0, U, num_harmonics=num_harmonics, random_phase=random_phase,
        noise_z=noise_z, out_dtype=jnp.bfloat16, **params)
    jax.block_until_ready((sine_bf, vmask_bf, noise_bf))
    assert sine_bf.dtype == jnp.bfloat16 and sine_bf.shape == (B, L * U, D)
    np.testing.assert_allclose(np.asarray(jnp.asarray(sine_bf, jnp.float32)),
                               np.asarray(ref_sine), atol=5e-3)

    # ---- ragged L, batch=1, wrapper-generated noise (exercises padding path) --
    L2 = 11
    raw2 = jax.random.uniform(k_f2, (1, L2), dtype=jnp.float32)
    f0b = jnp.where(raw2 > 0.3, 80.0 + 300.0 * raw2, 0.0)
    sine_r, vmask_r, noise_r = sine_generator_forward(
        f0b, U, num_harmonics=num_harmonics, random_phase=random_phase,
        rng_key=jax.random.PRNGKey(7), **params)
    jax.block_until_ready((sine_r, vmask_r, noise_r))
    assert sine_r.shape == (1, L2 * U, D)
    assert np.all(np.isfinite(np.asarray(sine_r)))
    ref_sine_r, _, _ = _reference_forward(
        f0b, U, random_phase, jnp.zeros((1, L2, U, D), jnp.float32), **params)
    np.testing.assert_allclose(np.asarray(sine_r - noise_r),
                               np.asarray(ref_sine_r), atol=1e-3)

    print("KERNEL_OK")
</pallas_src>

<mosaic_0001>
module attributes {stable_mosaic.version = 11 : i64} {
  func.func @kernel(%arg0: i32, %arg1: i32, %arg2: memref<1x8x8xf32, #tpu.memory_space<vmem>>, %arg3: memref<1x7x128xf32, #tpu.memory_space<vmem>>, %arg4: memref<1x8x128xf32, #tpu.memory_space<vmem>>, %arg5: memref<1x8x128xf32, #tpu.memory_space<vmem>>, %arg6: memref<1x8x128xf32, #tpu.memory_space<vmem>>) attributes {dimension_semantics = [#tpu.dimension_semantics<parallel>, #tpu.dimension_semantics<parallel>], iteration_bounds = array<i64: 2, 1>, scalar_prefetch = 0 : i64, scratch_operands = 0 : i64, tpu.core_type = #tpu.core_type<tc>, window_params = [{transform_indices = @transform_0, window_bounds = array<i64: 1, 8, 8>}, {pipeline_mode = #tpu.pipeline_mode<synchronous>, transform_indices = @transform_1, window_bounds = array<i64: 1, 7, 128>}, {transform_indices = @transform_2, window_bounds = array<i64: 1, 8, 128>}, {transform_indices = @transform_3, window_bounds = array<i64: 1, 8, 128>}, {transform_indices = @transform_4, window_bounds = array<i64: 1, 8, 128>}]} {
    %c0 = arith.constant 0 : index
    %c0_0 = arith.constant 0 : index
    %c0_1 = arith.constant 0 : index
    %0 = vector.load %arg2[%c0, %c0_0, %c0_1] : memref<1x8x8xf32, #tpu.memory_space<vmem>>, vector<1x8x8xf32>
    %c0_2 = arith.constant 0 : index
    %c0_3 = arith.constant 0 : index
    %c0_4 = arith.constant 0 : index
    %1 = vector.load %arg3[%c0_2, %c0_3, %c0_4] : memref<1x7x128xf32, #tpu.memory_space<vmem>>, vector<1x7x128xf32>
    %2 = vector.extract_strided_slice %1 {offsets = [0, 4, 0], sizes = [1, 1, 128], strides = [1, 1, 1]} : vector<1x7x128xf32> to vector<1x1x128xf32>
    %3 = vector.extract_strided_slice %0 {offsets = [0, 0, 0], sizes = [1, 8, 1], strides = [1, 1, 1]} : vector<1x8x8xf32> to vector<1x8x1xf32>
    %4 = vector.extract_strided_slice %0 {offsets = [0, 0, 2], sizes = [1, 8, 1], strides = [1, 1, 1]} : vector<1x8x8xf32> to vector<1x8x1xf32>
    %5 = vector.extract_strided_slice %0 {offsets = [0, 0, 4], sizes = [1, 8, 1], strides = [1, 1, 1]} : vector<1x8x8xf32> to vector<1x8x1xf32>
    %6 = vector.extract_strided_slice %0 {offsets = [0, 0, 6], sizes = [1, 8, 1], strides = [1, 1, 1]} : vector<1x8x8xf32> to vector<1x8x1xf32>
    %7 = vector.extract_strided_slice %1 {offsets = [0, 0, 0], sizes = [1, 1, 128], strides = [1, 1, 1]} : vector<1x7x128xf32> to vector<1x1x128xf32>
    %8 = vector.extract_strided_slice %1 {offsets = [0, 1, 0], sizes = [1, 1, 128], strides = [1, 1, 1]} : vector<1x7x128xf32> to vector<1x1x128xf32>
    %9 = vector.broadcast %3 : vector<1x8x1xf32> to vector<1x8x128xf32>
    %10 = vector.broadcast %7 : vector<1x1x128xf32> to vector<1x8x128xf32>
    %11 = arith.mulf %9, %10 : vector<1x8x128xf32>
    %12 = vector.broadcast %2 : vector<1x1x128xf32> to vector<1x8x128xf32>
    %13 = arith.addf %12, %11 : vector<1x8x128xf32>
    %14 = vector.broadcast %4 : vector<1x8x1xf32> to vector<1x8x128xf32>
    %15 = vector.broadcast %8 : vector<1x1x128xf32> to vector<1x8x128xf32>
    %16 = arith.mulf %14, %15 : vector<1x8x128xf32>
    %17 = arith.addf %13, %16 : vector<1x8x128xf32>
    %18 = vector.extract_strided_slice %1 {offsets = [0, 5, 0], sizes = [1, 1, 128], strides = [1, 1, 1]} : vector<1x7x128xf32> to vector<1x1x128xf32>
    %19 = vector.broadcast %5 : vector<1x8x1xf32> to vector<1x8x128xf32>
    %20 = vector.broadcast %18 : vector<1x1x128xf32> to vector<1x8x128xf32>
    %21 = arith.mulf %19, %20 : vector<1x8x128xf32>
    %22 = vector.broadcast %6 : vector<1x8x1xf32> to vector<1x8x128xf32>
    %23 = vector.broadcast %18 : vector<1x1x128xf32> to vector<1x8x128xf32>
    %24 = arith.mulf %22, %23 : vector<1x8x128xf32>
    %25 = vector.extract_strided_slice %0 {offsets = [0, 0, 1], sizes = [1, 8, 1], strides = [1, 1, 1]} : vector<1x8x8xf32> to vector<1x8x1xf32>
    %26 = vector.extract_strided_slice %0 {offsets = [0, 0, 3], sizes = [1, 8, 1], strides = [1, 1, 1]} : vector<1x8x8xf32> to vector<1x8x1xf32>
    %27 = vector.extract_strided_slice %0 {offsets = [0, 0, 5], sizes = [1, 8, 1], strides = [1, 1, 1]} : vector<1x8x8xf32> to vector<1x8x1xf32>
    %28 = vector.extract_strided_slice %0 {offsets = [0, 0, 7], sizes = [1, 8, 1], strides = [1, 1, 1]} : vector<1x8x8xf32> to vector<1x8x1xf32>
    %29 = vector.extract_strided_slice %1 {offsets = [0, 2, 0], sizes = [1, 1, 128], strides = [1, 1, 1]} : vector<1x7x128xf32> to vector<1x1x128xf32>
    %30 = vector.extract_strided_slice %1 {offsets = [0, 3, 0], sizes = [1, 1, 128], strides = [1, 1, 1]} : vector<1x7x128xf32> to vector<1x1x128xf32>
    %31 = vector.broadcast %25 : vector<1x8x1xf32> to vector<1x8x128xf32>
    %32 = vector.broadcast %29 : vector<1x1x128xf32> to vector<1x8x128xf32>
    %33 = arith.mulf %31, %32 : vector<1x8x128xf32>
    %34 = arith.addf %17, %33 : vector<1x8x128xf32>
    %35 = vector.broadcast %26 : vector<1x8x1xf32> to vector<1x8x128xf32>
    %36 = vector.broadcast %30 : vector<1x1x128xf32> to vector<1x8x128xf32>
    %37 = arith.mulf %35, %36 : vector<1x8x128xf32>
    %38 = arith.addf %34, %37 : vector<1x8x128xf32>
    %39 = vector.extract_strided_slice %1 {offsets = [0, 6, 0], sizes = [1, 1, 128], strides = [1, 1, 1]} : vector<1x7x128xf32> to vector<1x1x128xf32>
    %40 = vector.broadcast %27 : vector<1x8x1xf32> to vector<1x8x128xf32>
    %41 = vector.broadcast %39 : vector<1x1x128xf32> to vector<1x8x128xf32>
    %42 = arith.mulf %40, %41 : vector<1x8x128xf32>
    %43 = vector.broadcast %28 : vector<1x8x1xf32> to vector<1x8x128xf32>
    %44 = vector.broadcast %39 : vector<1x1x128xf32> to vector<1x8x128xf32>
    %45 = arith.mulf %43, %44 : vector<1x8x128xf32>
    %46 = arith.addf %21, %42 : vector<1x8x128xf32>
    %47 = arith.addf %24, %45 : vector<1x8x128xf32>
    %48 = math.floor %38 : vector<1x8x128xf32>
    %49 = arith.subf %38, %48 : vector<1x8x128xf32>
    %cst = arith.constant 6.28318548 : f32
    %50 = vector.broadcast %cst : f32 to vector<1x8x128xf32>
    %51 = arith.mulf %50, %49 : vector<1x8x128xf32>
    %52 = math.sin %51 : vector<1x8x128xf32>
    %53 = arith.mulf %52, %46 : vector<1x8x128xf32>
    %c0_5 = arith.constant 0 : index
    %c0_6 = arith.constant 0 : index
    %c0_7 = arith.constant 0 : index
    %54 = vector.load %arg4[%c0_5, %c0_6, %c0_7] : memref<1x8x128xf32, #tpu.memory_space<vmem>>, vector<1x8x128xf32>
    %55 = arith.mulf %47, %54 : vector<1x8x128xf32>
    %c0_8 = arith.constant 0 : index
    %c0_9 = arith.constant 0 : index
    %c0_10 = arith.constant 0 : index
    %56 = vector.load %arg6[%c0_8, %c0_9, %c0_10] : memref<1x8x128xf32, #tpu.memory_space<vmem>>, vector<1x8x128xf32>
    tpu.vector_store %arg6[%c0_8, %c0_9, %c0_10], %55 {strides = array<i32>} : memref<1x8x128xf32, #tpu.memory_space<vmem>>, vector<1x8x128xf32>,
    %57 = arith.addf %53, %55 : vector<1x8x128xf32>
    %c0_11 = arith.constant 0 : index
    %c0_12 = arith.constant 0 : index
    %c0_13 = arith.constant 0 : index
    %58 = vector.load %arg5[%c0_11, %c0_12, %c0_13] : memref<1x8x128xf32, #tpu.memory_space<vmem>>, vector<1x8x128xf32>
    tpu.vector_store %arg5[%c0_11, %c0_12, %c0_13], %57 {strides = array<i32>} : memref<1x8x128xf32, #tpu.memory_space<vmem>>, vector<1x8x128xf32>,
    return
  }
  func.func @transform_0(%arg0: i32, %arg1: i32) -> (i32, i32, i32) {
    %c0_i32 = arith.constant 0 : i32
    %c0_i32_0 = arith.constant 0 : i32
    return %arg0, %arg1, %c0_i32 : i32, i32, i32
  }
  func.func @transform_1(%arg0: i32, %arg1: i32) -> (i32, i32, i32) {
    %c0_i32 = arith.constant 0 : i32
    %c0_i32_0 = arith.constant 0 : i32
    %c0_i32_1 = arith.constant 0 : i32
    %c0_i32_2 = arith.constant 0 : i32
    return %c0_i32, %c0_i32_0, %c0_i32_1 : i32, i32, i32
  }
  func.func @transform_2(%arg0: i32, %arg1: i32) -> (i32, i32, i32) {
    %c0_i32 = arith.constant 0 : i32
    %c0_i32_0 = arith.constant 0 : i32
    return %arg0, %arg1, %c0_i32 : i32, i32, i32
  }
  func.func @transform_3(%arg0: i32, %arg1: i32) -> (i32, i32, i32) {
    %c0_i32 = arith.constant 0 : i32
    %c0_i32_0 = arith.constant 0 : i32
    return %arg0, %arg1, %c0_i32 : i32, i32, i32
  }
  func.func @transform_4(%arg0: i32, %arg1: i32) -> (i32, i32, i32) {
    %c0_i32 = arith.constant 0 : i32
    %c0_i32_0 = arith.constant 0 : i32
    return %arg0, %arg1, %c0_i32 : i32, i32, i32
  }
}

</mosaic_0001>

<llo_original>
// kernel: tpu_custom_call.1
$region0: #{tpu_custom_call.1}
  #allocation0 [shape = 'u32[]', space=smem, size = 0x4, offset = 0x4, fixed_abs, tag = 'smem constant byte address 0x4 - core index']
  #allocation1 [shape = 'u32[144,128]{1,0:T(1,128)}', space=vmem, size = 0x12000, scoped, tag = 'internal scratch']
  %s0 = inlined_call_operand.hbm [shape: f32[2,8,8], index: 0, kind: input, shape index: {}]
  %s1 = inlined_call_operand.vmem [shape: f32[1,7,128], index: 1, kind: input, shape index: {}]
  %s2 = inlined_call_operand.vmem [shape: f32[2,8,128], index: 2, kind: input, shape index: {}]
  %s3 = inlined_call_operand.hbm [shape: f32[2,8,128], index: 3, kind: output, shape index: {0}]
  %s4 = inlined_call_operand.hbm [shape: f32[2,8,128], index: 4, kind: output, shape index: {1}]
  %5 = xla_tuple %s3, %s4
  %s6 = sld [smem:[#allocation0]]
  $region57: #{tpu_custom_call.1} parent=0
    _
  %s8 = ssub.s32 1, %s6
  %s9 = scalar_select 0, %s8, %s6
  $region1: #{tpu_custom_call.1} parent=0
    #allocation2 [shape = 'u8[8192]{0}', space=vmem, size = 0x2000, scoped, tag = 'input window, operand 0']
    #allocation3 [shape = 's32[2]{0}', space=sflag, size = 0x8, scoped, tag = 'scoped memory for tpu_custom_call.1']
    #allocation4 [shape = 's32[2]{0}', space=sflag, size = 0x8, scoped, tag = 'scoped memory for tpu_custom_call.1']
    #allocation5 [shape = 'u8[8192]{0}', space=vmem, size = 0x2000, scoped, tag = 'output window, operand 0']
    #allocation6 [shape = 'u8[8192]{0}', space=vmem, size = 0x2000, scoped, tag = 'output window, operand 1']
    #allocation7 [shape = 's32[2]{0}', space=sflag, size = 0x8, scoped, tag = 'scoped memory for tpu_custom_call.1']
    %10 = vsyncpa [#allocation3], 0
    %s11 = scalar_lea.sflag [#allocation3], 1
    %12 = vsyncpa %s11, 0
    %13 = vsyncpa [#allocation4], 0
    %s14 = scalar_lea.sflag [#allocation4], 1
    %15 = vsyncpa %s14, 0
    %16 = vsyncpa [#allocation7], 0
    %s17 = scalar_lea.sflag [#allocation7], 1
    %18 = vsyncpa %s17, 0
    loop: start=0, step=1, limit=4
    $region2: #{tpu_custom_call.1} parent=1 // loop_pre_header
      _
    $region3: #{tpu_custom_call.1} parent=1 // loop_header
      %s20 = sphi 0, %s24
      %p21 = scmp.ge.s32.totalorder %s20, 4
      %s27 = sphi 0, %s39
      %s28 = sphi 0, %s35
      %s29 = sphi 0, %s27
      %s30 = sphi 0, %s28
      %s31 = sphi 0, %s29
      %s32 = sphi 0, %s30
      %s44 = sphi 0, %s46
      %s47 = sphi 0, %s44
      %s48 = sphi 0, %s47
      %s64 = sphi 0, %s48
      %s68 = sphi 0, %s68
      %s70 = sphi 0, %s68
      %s71 = sphi 0, %s70
      %s85 = sphi 0, %s71
      %s93 = sphi 0, %s95
      %s96 = sphi 0, %s93
      %s97 = sphi 0, %s96
      %s113 = sphi 0, %s97
      %s121 = sphi 0, %s123
      %s124 = sphi 0, %s121
      %s125 = sphi 0, %s124
      %s141 = sphi 0, %s125
      %s149 = sphi 0, %s151
      %s152 = sphi 0, %s149
      %s153 = sphi 0, %s152
      %s169 = sphi 0, %s153
    $region4: #{tpu_custom_call.1} parent=1 // loop_header_branch
      %23 = sbr.rel (%p21) target = $region8
    $region5: #{tpu_custom_call.1} parent=1 // loop_body
      %s25 = ssub.s32 %s20, 1
      %s26 = ssub.s32 %s20, 2
      %s33 = sadd.s32 1, %s28
      %p34 = scmp.ge.s32.totalorder %s33, 1
      %s35 = scalar_select %p34, 0, %s33
      %s36 = sadd.s32 1, %s27
      %s37 = scalar_select %p34, %s36, %s27
      %p38 = scmp.ge.s32.totalorder %s37, 2
      %s39 = scalar_select %p38, 0, %s37
      %s40 = ssub.s32 %s27, %s39
      %s41 = ssub.s32 %s28, %s35
      %s42 = sor.u32 %s40, %s41
      %p43 = scmp.eq.s32.totalorder %s42, 0
      %s45 = sadd.s32 %s44, 1
      %s46 = scalar_select %p43, %s44, %s45
      %p49 = pneg %p43
      %p50 = scmp.eq.s32.totalorder %s20, 1
      %p51 = por %p49, %p50
      %p52 = scmp.ne.s32.totalorder %s44, %s47
      %p53 = scmp.eq.s32.totalorder %s20, 0
      %p54 = por %p52, %p53
      %p55 = scmp.ne.s32.totalorder %s44, %s47
      %p56 = scmp.eq.s32.totalorder %s25, 1
      %p57 = por %p55, %p56
      %p58 = scmp.ne.s32.totalorder %s47, %s48
      %p59 = scmp.eq.s32.totalorder %s25, 0
      %p60 = por %p58, %p59
      %p61 = scmp.ne.s32.totalorder %s47, %s48
      %p62 = scmp.eq.s32.totalorder %s26, 1
      %p63 = por %p61, %p62
      %p65 = scmp.ne.s32.totalorder %s48, %s64
      %p66 = scmp.eq.s32.totalorder %s26, 0
      %p67 = por %p65, %p66
      %s69 = sadd.s32 %s68, 1
      %p72 = scmp.eq.s32.totalorder %s20, 1
      %p73 = scmp.ne.s32.totalorder %s68, %s70
      %p74 = scmp.eq.s32.totalorder %s20, 0
      %p75 = por %p73, %p74
      %p76 = scmp.ne.s32.totalorder %s68, %s70
      %p77 = scmp.eq.s32.totalorder %s25, 1
      %p78 = por %p76, %p77
      %p79 = scmp.ne.s32.totalorder %s70, %s71
      %p80 = scmp.eq.s32.totalorder %s25, 0
      %p81 = por %p79, %p80
      %p82 = scmp.ne.s32.totalorder %s70, %s71
      %p83 = scmp.eq.s32.totalorder %s26, 1
      %p84 = por %p82, %p83
      %p86 = scmp.ne.s32.totalorder %s71, %s85
      %p87 = scmp.eq.s32.totalorder %s26, 0
      %p88 = por %p86, %p87
      %s89 = ssub.s32 %s27, %s39
      %s90 = ssub.s32 %s28, %s35
      %s91 = sor.u32 %s89, %s90
      %p92 = scmp.eq.s32.totalorder %s91, 0
      %s94 = sadd.s32 %s93, 1
      %s95 = scalar_select %p92, %s93, %s94
      %p98 = pneg %p92
      %p99 = scmp.eq.s32.totalorder %s20, 1
      %p100 = por %p98, %p99
      %p101 = scmp.ne.s32.totalorder %s93, %s96
      %p102 = scmp.eq.s32.totalorder %s20, 0
      %p103 = por %p101, %p102
      %p104 = scmp.ne.s32.totalorder %s93, %s96
      %p105 = scmp.eq.s32.totalorder %s25, 1
      %p106 = por %p104, %p105
      %p107 = scmp.ne.s32.totalorder %s96, %s97
      %p108 = scmp.eq.s32.totalorder %s25, 0
      %p109 = por %p107, %p108
      %p110 = scmp.ne.s32.totalorder %s96, %s97
      %p111 = scmp.eq.s32.totalorder %s26, 1
      %p112 = por %p110, %p111
      %p114 = scmp.ne.s32.totalorder %s97, %s113
      %p115 = scmp.eq.s32.totalorder %s26, 0
      %p116 = por %p114, %p115
      %s117 = ssub.s32 %s27, %s39
      %s118 = ssub.s32 %s28, %s35
      %s119 = sor.u32 %s117, %s118
      %p120 = scmp.eq.s32.totalorder %s119, 0
      %s122 = sadd.s32 %s121, 1
      %s123 = scalar_select %p120, %s121, %s122
      %p126 = pneg %p120
      %p127 = scmp.eq.s32.totalorder %s20, 1
      %p128 = por %p126, %p127
      %p129 = scmp.ne.s32.totalorder %s121, %s124
      %p130 = scmp.eq.s32.totalorder %s20, 0
      %p131 = por %p129, %p130
      %p132 = scmp.ne.s32.totalorder %s121, %s124
      %p133 = scmp.eq.s32.totalorder %s25, 1
      %p134 = por %p132, %p133
      %p135 = scmp.ne.s32.totalorder %s124, %s125
      %p136 = scmp.eq.s32.totalorder %s25, 0
      %p137 = por %p135, %p136
      %p138 = scmp.ne.s32.totalorder %s124, %s125
      %p139 = scmp.eq.s32.totalorder %s26, 1
      %p140 = por %p138, %p139
      %p142 = scmp.ne.s32.totalorder %s125, %s141
      %p143 = scmp.eq.s32.totalorder %s26, 0
      %p144 = por %p142, %p143
      %s145 = ssub.s32 %s27, %s39
      %s146 = ssub.s32 %s28, %s35
      %s147 = sor.u32 %s145, %s146
      %p148 = scmp.eq.s32.totalorder %s147, 0
      %s150 = sadd.s32 %s149, 1
      %s151 = scalar_select %p148, %s149, %s150
      %p154 = pneg %p148
      %p155 = scmp.eq.s32.totalorder %s20, 1
      %p156 = por %p154, %p155
      %p157 = scmp.ne.s32.totalorder %s149, %s152
      %p158 = scmp.eq.s32.totalorder %s20, 0
      %p159 = por %p157, %p158
      %p160 = scmp.ne.s32.totalorder %s149, %s152
      %p161 = scmp.eq.s32.totalorder %s25, 1
      %p162 = por %p160, %p161
      %p163 = scmp.ne.s32.totalorder %s152, %s153
      %p164 = scmp.eq.s32.totalorder %s25, 0
      %p165 = por %p163, %p164
      %p166 = scmp.ne.s32.totalorder %s152, %s153
      %p167 = scmp.eq.s32.totalorder %s26, 1
      %p168 = por %p166, %p167
      %p170 = scmp.ne.s32.totalorder %s153, %s169
      %p171 = scmp.eq.s32.totalorder %s26, 0
      %p172 = por %p170, %p171
      %p173 = scmp.le.s32.totalorder 1, %s20
      %p174 = scmp.lt.s32.totalorder %s20, 3
      %p175 = pnand %p173, %p174
      %p176 = pneg %p175
      // Predicated region
      $region9: #{tpu_custom_call.1} parent=5 // pred_check
        _
      $region10: #{tpu_custom_call.1} parent=5 // pred_check_branch
        %178 = sbr.rel (%p175) target = $region12
      $region11: #{tpu_custom_call.1} parent=5 // pred_region
        %s179 = ssub.s32 %s20, 1
        // Predicated region
        $region13: #{tpu_custom_call.1} parent=11 // pred_check
          %p180 = pneg %p81
        $region14: #{tpu_custom_call.1} parent=11 // pred_check_branch
          %182 = sbr.rel (%p180) target = $region16
        $region15: #{tpu_custom_call.1} parent=11 // pred_region
          _
        $region16: #{tpu_custom_call.1} parent=11 // pred_fallthru
          _
      $region12: #{tpu_custom_call.1} parent=5 // pred_fallthru
        _
      %p183 = scmp.lt.s32.totalorder %s20, 2
      // Predicated region
      $region17: #{tpu_custom_call.1} parent=5 // pred_check
        %p184 = pneg %p183
      $region18: #{tpu_custom_call.1} parent=5 // pred_check_branch
        %186 = sbr.rel (%p184) target = $region20
      $region19: #{tpu_custom_call.1} parent=5 // pred_region
        // Predicated region
        $region21: #{tpu_custom_call.1} parent=19 // pred_check
          %p187 = pneg %p54
        $region22: #{tpu_custom_call.1} parent=19 // pred_check_branch
          %189 = sbr.rel (%p187) target = $region24
        $region23: #{tpu_custom_call.1} parent=19 // pred_region
          %s190 = sand.u32 %s44, 1
          %s191 = scalar_lea.sflag [#allocation3], %s190
          %s192 = sand.u32 %s44, 1
          %s193 = smul.addr %s192, 8
          %s194 = scalar_lea.vmem [#allocation2], %s193
          %s196 = ssub.s32 128, 128
          %197 = vsyncadd %s191, %s196
          %s198 = sadd.s32 %s28, %s27
          %s199 = smul.addr %s198, 128
          %s200 = scalar_lea.hbm %s0, %s199
          %s202 = sshll.u32 %s194, 4
          %s203 = int_to_ptr.vmem [resolvable:$true] %s202
          %205 = dma.hbm_to_vmem [thread:$0]  %s200, 128, %s203, %s191
        $region24: #{tpu_custom_call.1} parent=19 // pred_fallthru
          _
        // Predicated region
        $region25: #{tpu_custom_call.1} parent=19 // pred_check
          %p206 = pneg %p103
        $region26: #{tpu_custom_call.1} parent=19 // pred_check_branch
          %208 = sbr.rel (%p206) target = $region28
        $region27: #{tpu_custom_call.1} parent=19 // pred_region
          %p209 = scmp.lt.s32.totalorder %s27, 1
          %s210 = scalar_select %p209, %s27, 1
          %p211 = scmp.lt.s32.totalorder %s28, 0
          %s212 = scalar_select %p211, %s28, 0
          %s213 = sadd.s32 %s212, %s210
          %s214 = smul.addr %s213, 8
          %s215 = scalar_lea.vmem %s2, %s214
        $region28: #{tpu_custom_call.1} parent=19 // pred_fallthru
          _
      $region20: #{tpu_custom_call.1} parent=5 // pred_fallthru
        _
      %p216 = scmp.le.s32.totalorder 1, %s20
      %p217 = scmp.lt.s32.totalorder %s20, 3
      %p218 = pnand %p216, %p217
      %p219 = pneg %p218
      // Predicated region
      $region29: #{tpu_custom_call.1} parent=5 // pred_check
        _
      $region30: #{tpu_custom_call.1} parent=5 // pred_check_branch
        %221 = sbr.rel (%p218) target = $region32
      $region31: #{tpu_custom_call.1} parent=5 // pred_region
        %s222 = ssub.s32 %s20, 1
        %s223 = sand.u32 %s47, 1
        %s224 = scalar_lea.sflag [#allocation3], %s223
        %s225 = sand.u32 %s47, 1
        %s226 = smul.addr %s225, 8
        %s227 = scalar_lea.vmem [#allocation2], %s226
        // Predicated region
        $region33: #{tpu_custom_call.1} parent=31 // pred_check
          %p228 = pneg %p60
        $region34: #{tpu_custom_call.1} parent=31 // pred_check_branch
          %230 = sbr.rel (%p228) target = $region36
        $region35: #{tpu_custom_call.1} parent=31 // pred_region
          %231 = dma.done %s224, 128
        $region36: #{tpu_custom_call.1} parent=31 // pred_fallthru
          _
        %s232 = sand.u32 %s47, 1
        %s233 = scalar_lea.sflag [#allocation3], %s232
        %s234 = sand.u32 %s47, 1
        %s235 = smul.addr %s234, 8
        %s236 = scalar_lea.vmem [#allocation2], %s235
        %p237 = pneg %p60
        %p238 = pneg %p57
        %p239 = pneg %p81
        %p240 = pneg %p78
        %p241 = scmp.lt.s32.totalorder %s29, 1
        %s242 = scalar_select %p241, %s29, 1
        %p243 = scmp.lt.s32.totalorder %s30, 0
        %s244 = scalar_select %p243, %s30, 0
        %s245 = sadd.s32 %s244, %s242
        %s246 = smul.addr %s245, 8
        %s247 = scalar_lea.vmem %s2, %s246
        %p248 = pneg %p109
        %p249 = pneg %p106
        %p250 = pneg %p137
        %p251 = pneg %p134
        %s252 = sand.u32 %s124, 1
        %s253 = scalar_lea.sflag [#allocation4], %s252
        %s254 = sand.u32 %s124, 1
        %s255 = smul.addr %s254, 8
        %s256 = scalar_lea.vmem [#allocation5], %s255
        %p257 = pneg %p165
        %p258 = pneg %p162
        %s259 = sand.u32 %s152, 1
        %s260 = scalar_lea.sflag [#allocation7], %s259
        %s261 = sand.u32 %s152, 1
        %s262 = smul.addr %s261, 8
        %s263 = scalar_lea.vmem [#allocation6], %s262
        %p264 = scmp.lt.s32.totalorder %s29, 1
        %s265 = scalar_select %p264, %s29, 1
        %p266 = scmp.lt.s32.totalorder %s30, 0
        %s267 = scalar_select %p266, %s30, 0
        %s268 = sadd.s32 %s267, %s265
        %s269 = smul.addr %s268, 8
        %s270 = scalar_lea.vmem %s2, %s269
        %v271 = vld [vmem:[%s227] sm:$0xff]
        %v272 = vld [vmem:[%s1] sm:$0x7f]
        %274 = vset.pattern.permute.xlu0 0
        %275 = vperm.xlu0 %274, %v271
        %v276 = vpop.permute.xlu0 %275
        %v278 = vlaneseq
        %v279 = vshrl.u32 %v278, 7
        %v280 = vsub.s32 0, %v279
        %v281 = vrot.slane %v272, %v280
        %v282 = vmul.f32 %v276, %v281
        %v283 = vlaneseq
        %v284 = vshrl.u32 %v283, 7
        %v285 = vsub.s32 4, %v284
        %v286 = vrot.slane %v272, %v285
        %v287 = vadd.f32 %v286, %v282
        %288 = vset.pattern.permute.xlu0 2
        %289 = vperm.xlu0 %288, %v271
        %v290 = vpop.permute.xlu0 %289
        %v292 = vlaneseq
        %v293 = vshrl.u32 %v292, 7
        %v294 = vsub.s32 1, %v293
        %v295 = vrot.slane %v272, %v294
        %v296 = vmul.f32 %v290, %v295
        %v297 = vadd.f32 %v287, %v296
        %298 = vset.pattern.permute.xlu0 4
        %299 = vperm.xlu0 %298, %v271
        %v300 = vpop.permute.xlu0 %299
        %v302 = vlaneseq
        %v303 = vshrl.u32 %v302, 7
        %v304 = vsub.s32 5, %v303
        %v305 = vrot.slane %v272, %v304
        %v306 = vmul.f32 %v300, %v305
        %307 = vset.pattern.permute.xlu0 6
        %308 = vperm.xlu0 %307, %v271
        %v309 = vpop.permute.xlu0 %308
        %v311 = vmul.f32 %v309, %v305
        %312 = vset.pattern.permute.xlu0 1
        %313 = vperm.xlu0 %312, %v271
        %v314 = vpop.permute.xlu0 %313
        %v316 = vlaneseq
        %v317 = vshrl.u32 %v316, 7
        %v318 = vsub.s32 2, %v317
        %v319 = vrot.slane %v272, %v318
        %v320 = vmul.f32 %v314, %v319
        %v321 = vadd.f32 %v297, %v320
        %322 = vset.pattern.permute.xlu0 3
        %323 = vperm.xlu0 %322, %v271
        %v324 = vpop.permute.xlu0 %323
        %v326 = vlaneseq
        %v327 = vshrl.u32 %v326, 7
        %v328 = vsub.s32 3, %v327
        %v329 = vrot.slane %v272, %v328
        %v330 = vmul.f32 %v324, %v329
        %v331 = vadd.f32 %v321, %v330
        %332 = vset.pattern.permute.xlu0 5
        %333 = vperm.xlu0 %332, %v271
        %v334 = vpop.permute.xlu0 %333
        %v336 = vlaneseq
        %v337 = vshrl.u32 %v336, 7
        %v338 = vsub.s32 6, %v337
        %v339 = vrot.slane %v272, %v338
        %v340 = vmul.f32 %v334, %v339
        %341 = vset.pattern.permute.xlu0 7
        %342 = vperm.xlu0 %341, %v271
        %v343 = vpop.permute.xlu0 %342
        %v345 = vmul.f32 %v343, %v339
        %v346 = vadd.f32 %v306, %v340
        %v347 = vadd.f32 %v311, %v345
        %v348 = vfloor.f32 %v331
        %v349 = vsub.f32 %v331, %v348
        %v350 = vmul.f32 %v349, 6.2831855
        %v351 = vand.u32 2147483647, %v350
        %vm352 = vcmp.le.f32.partialorder %v351, 0.7853982
        %vm353 = vcmp.lt.s32.totalorder %v350, 0
        %v354 = vand.u32 %v350, 2139095040
        %v355 = vshrl.u32 %v354, 23
        %v356 = vsub.s32 %v355, 127
        %v357 = vand.u32 2147483647, %v350
        %v358 = vand.u32 %v357, 8388607
        %v359 = vor.u32 %v358, 8388608
        %v360 = vsub.s32 0, %v359
        %v361 = vadd.s32 %v356, 1
        %vm362 = vcmp.gt.s32.totalorder %v361, 0
        %v363 = vsel %vm362, %v361, 0
        %v364 = vshrl.u32 %v363, 5
        %v365 = vand.u32 %v363, 31
        %v366 = vsub.s32 32, %v365
        %v367 = vshrl.u32 683565275, %v366
        %v368 = vshll.u32 683565275, %v365
        %v369 = vshrl.u32 2475754826, %v366
        %v370 = vor.u32 %v368, %v369
        %v371 = vshll.u32 2475754826, %v365
        %v372 = vshrl.u32 2131351028, %v366
        %v373 = vor.u32 %v371, %v372
        %v374 = vshll.u32 2131351028, %v365
        %v375 = vshrl.u32 2102212464, %v366
        %v376 = vor.u32 %v374, %v375
        %v377 = vshll.u32 2102212464, %v365
        %v378 = vshrl.u32 920167782, %v366
        %v379 = vor.u32 %v377, %v378
        %v380 = vshll.u32 920167782, %v365
        %v381 = vshrl.u32 1326507024, %v366
        %v382 = vor.u32 %v380, %v381
        %vm383 = vcmp.lt.s32.totalorder %v364, 1
        %vm384 = vcmp.lt.s32.totalorder %v364, 2
        %vm385 = vcmp.lt.s32.totalorder %v364, 3
        %vm386 = vcmp.lt.s32.totalorder %v364, 4
        %v387 = vsel %vm383, %v367, %v370
        %v388 = vsel %vm386, %v376, 2102212464
        %v389 = vsel %vm385, %v373, %v388
        %v390 = vsel %vm384, %v387, %v389
        %v391 = vsel %vm383, %v370, %v373
        %v392 = vsel %vm386, %v379, 920167782
        %v393 = vsel %vm385, %v376, %v392
        %v394 = vsel %vm384, %v391, %v393
        %v395 = vsel %vm383, %v373, %v376
        %v396 = vsel %vm386, %v382, 1326507024
        %v397 = vsel %vm385, %v379, %v396
        %v398 = vsel %vm384, %v395, %v397
        %v399 = vshll.u32 %v359, 8
        %v400 = vmul.u32.u64.compose %v399, %v398
        %v401 = vextract.low.u32 %v400
        %v402 = vextract.high.u32 %v400
        %v403 = vmul.u32.u64.compose %v399, %v394
        %v404 = vextract.low.u32 %v403
        %v405 = vextract.high.u32 %v403
        %v406 = vmul.u32 %v399, %v390
        %v407 = vadd.s32 %v402, %v404
        %vm408 = vc.u32 %v402, %v404
        %v409 = vadd.s32 %v405, 1
        %v410 = vsel %vm408, %v409, %v405
        %v411 = vadd.s32 %v406, %v410
        %v412 = vadd.s32 %v411, 536870912
        %v413 = vshrl.u32 %v412, 30
        %v414 = vshll.u32 %v413, 30
        %v415 = vsub.s32 %v411, %v414
        %vm416 = vcmp.lt.s32.totalorder %v415, 0
        %v417 = vsub.s32 0, %v415
        %v418 = vsel %vm416, %v417, %v415
        %v419 = vclz %v418
        %v420 = vsub.s32 %v419, 2
        %vm421 = vcmp.gt.s32.totalorder 0, %v420
        %v422 = vsel %vm421, 0, %v420
        %v423 = vsub.s32 32, %v422
        %v424 = vshll.u32 %v415, %v422
        %v425 = vshrl.u32 %v407, %v423
        %v426 = vor.u32 %v424, %v425
        %v427 = vsub.s32 4294967266, %v422
        %v428 = vadd.s32 %v427, 127
        %v429 = vshll.u32 %v428, 23
        %v430 = vor.u32 4788187, %v429
        %v431 = vand.u32 2147483647, %v430
        %v433 = vcvt.s32.f32 %v426
        %v434 = vmul.f32 %v433, %v431
        %v435 = vxor.u32 %v434, 2147483648
        %v436 = vsel %vm353, %v435, %v434
        %v437 = vsub.s32 4, %v413
        %v438 = vsel %vm353, %v437, %v413
        %v439 = vsel %vm352, %v350, %v436
        %v440 = vsel %vm352, 0, %v438
        %v441 = vcosq.f32.pop %v439
        %v442 = vsinq.f32.pop %v439
        %vm443 = vweird.f32 %v350
        %v444 = vadd.s32 %v440, 3
        %v445 = vand.u32 %v444, 3
        %vm446 = vcmp.lt.s32.totalorder %v445, 2
        %vm447 = vcmp.eq.s32.totalorder %v445, 0
        %v448 = vxor.u32 %v442, 2147483648
        %v449 = vsel %vm447, %v441, %v448
        %vm450 = vcmp.eq.s32.totalorder %v445, 2
        %v451 = vxor.u32 %v441, 2147483648
        %v452 = vsel %vm450, %v451, %v442
        %v453 = vsel %vm446, %v449, %v452
        %v454 = vsel %vm443, nan, %v453
        %v455 = vmul.f32 %v454, %v346
        %v456 = vld [vmem:[%s270] sm:$0xff]
        %v457 = vmul.f32 %v347, %v456
        %458 = vst [vmem:[%s263] sm:$0xff] %v457
        %v459 = vadd.f32 %v455, %v457
        %460 = vst [vmem:[%s256] sm:$0xff] %v459
        %s461 = sand.u32 %s124, 1
        %s462 = scalar_lea.sflag [#allocation4], %s461
        %s463 = sand.u32 %s124, 1
        %s464 = smul.addr %s463, 8
        %s465 = scalar_lea.vmem [#allocation5], %s464
        %s466 = sand.u32 %s152, 1
        %s467 = scalar_lea.sflag [#allocation7], %s466
        %s468 = sand.u32 %s152, 1
        %s469 = smul.addr %s468, 8
        %s470 = scalar_lea.vmem [#allocation6], %s469
        // Predicated region
        $region37: #{tpu_custom_call.1} parent=31 // pred_check
          %p471 = pneg %p134
        $region38: #{tpu_custom_call.1} parent=31 // pred_check_branch
          %473 = sbr.rel (%p471) target = $region40
        $region39: #{tpu_custom_call.1} parent=31 // pred_region
          %s475 = ssub.s32 128, 128
          %476 = vsyncadd %s462, %s475
          %s477 = sadd.s32 %s30, %s29
          %s478 = smul.addr %s477, 128
          %s479 = scalar_lea.hbm %s3, %s478
          %s481 = sshll.u32 %s465, 4
          %s482 = int_to_ptr.vmem [resolvable:$true] %s481
          %484 = dma.vmem_to_hbm [thread:$0]  %s482, 128, %s479, %s462
        $region40: #{tpu_custom_call.1} parent=31 // pred_fallthru
          _
        // Predicated region
        $region41: #{tpu_custom_call.1} parent=31 // pred_check
          %p485 = pneg %p162
        $region42: #{tpu_custom_call.1} parent=31 // pred_check_branch
          %487 = sbr.rel (%p485) target = $region44
        $region43: #{tpu_custom_call.1} parent=31 // pred_region
          %s489 = ssub.s32 128, 128
          %490 = vsyncadd %s467, %s489
          %s491 = sadd.s32 %s30, %s29
          %s492 = smul.addr %s491, 128
          %s493 = scalar_lea.hbm %s4, %s492
          %s495 = sshll.u32 %s470, 4
          %s496 = int_to_ptr.vmem [resolvable:$true] %s495
          %498 = dma.vmem_to_hbm [thread:$0]  %s496, 128, %s493, %s467
        $region44: #{tpu_custom_call.1} parent=31 // pred_fallthru
          _
      $region32: #{tpu_custom_call.1} parent=5 // pred_fallthru
        _
      %p499 = scmp.le.s32.totalorder 2, %s20
      // Predicated region
      $region45: #{tpu_custom_call.1} parent=5 // pred_check
        %p500 = pneg %p499
      $region46: #{tpu_custom_call.1} parent=5 // pred_check_branch
        %502 = sbr.rel (%p500) target = $region48
      $region47: #{tpu_custom_call.1} parent=5 // pred_region
        %s503 = ssub.s32 %s20, 2
        // Predicated region
        $region49: #{tpu_custom_call.1} parent=47 // pred_check
          %p504 = pneg %p140
        $region50: #{tpu_custom_call.1} parent=47 // pred_check_branch
          %506 = sbr.rel (%p504) target = $region52
        $region51: #{tpu_custom_call.1} parent=47 // pred_region
          %s507 = sand.u32 %s125, 1
          %s508 = scalar_lea.sflag [#allocation4], %s507
          %s509 = sand.u32 %s125, 1
          %s510 = smul.addr %s509, 8
          %s511 = scalar_lea.vmem [#allocation5], %s510
          %512 = dma.done %s508, 128
        $region52: #{tpu_custom_call.1} parent=47 // pred_fallthru
          _
        // Predicated region
        $region53: #{tpu_custom_call.1} parent=47 // pred_check
          %p513 = pneg %p168
        $region54: #{tpu_custom_call.1} parent=47 // pred_check_branch
          %515 = sbr.rel (%p513) target = $region56
        $region55: #{tpu_custom_call.1} parent=47 // pred_region
          %s516 = sand.u32 %s153, 1
          %s517 = scalar_lea.sflag [#allocation7], %s516
          %s518 = sand.u32 %s153, 1
          %s519 = smul.addr %s518, 8
          %s520 = scalar_lea.vmem [#allocation6], %s519
          %521 = dma.done %s517, 128
        $region56: #{tpu_custom_call.1} parent=47 // pred_fallthru
          _
      $region48: #{tpu_custom_call.1} parent=5 // pred_fallthru
        _
    $region6: #{tpu_custom_call.1} parent=1 // loop_footer
      %s24 = sadd.s32 1, %s20
    $region7: #{tpu_custom_call.1} parent=1 // loop_footer_branch
      %19 = sbr.rel target = $region3
    $region8: #{tpu_custom_call.1} parent=1 // loop_exit
      _
    %522 = vsyncpa [#allocation3], 1
    %s523 = scalar_lea.sflag [#allocation3], 1
    %524 = vsyncpa %s523, 1
    %525 = vsyncpa [#allocation4], 1
    %s526 = scalar_lea.sflag [#allocation4], 1
    %527 = vsyncpa %s526, 1
    %528 = vsyncpa [#allocation7], 1
    %s529 = scalar_lea.sflag [#allocation7], 1
    %530 = vsyncpa %s529, 1

</llo_original>
